<compile_context>
chip_gen: v6e
topology: v6e:2x2x1
jax: 0.10.0
libtpu: 0.0.40
codegen_flags: <defaults>
</compile_context>

<pallas_src>
import jax
import jax.numpy as jnp
import numpy as np
from jax.experimental import pallas as pl
from jax.experimental.pallas import tpu as pltpu

_EPS = 1e-5
_LANE = 128


# ----------------------------- Pallas kernel ------------------------------- #

def _matmul_bias_relu_kernel(p_ref, w_ref, b_ref, o_ref, acc_ref):
    """o = relu(p @ w + b), accumulated over the K grid axis in f32 scratch."""
    k = pl.program_id(1)

    @pl.when(k == 0)
    def _():
        acc_ref[...] = jnp.zeros_like(acc_ref)

    acc_ref[...] += jnp.dot(p_ref[...], w_ref[...],
                            preferred_element_type=jnp.float32)

    @pl.when(k == pl.num_programs(1) - 1)
    def _():
        o_ref[...] = jnp.maximum(acc_ref[...] + b_ref[...], 0.0
                                 ).astype(o_ref.dtype)


# ------------------------------ tiling helpers ------------------------------ #

def _round_up(x, m):
    return (x + m - 1) // m * m


def _pick_tm(M, cap=512):
    """Row tile: multiple of 8, up to `cap`, but (when M allows) small enough
    that the parallel grid has >= 2 steps so both v7x TensorCores get work."""
    if M <= 16:
        return 8
    return max(8, (min(cap, M // 2) // 8) * 8)


def _pick_tk(K, cap=512):
    """Full K when small (single reduction step, block == full dim); otherwise
    a 128-multiple tile so blocks respect the (8,128) constraint."""
    if K <= 1024:
        return K
    return cap


def _fused_matmul_bias_relu(patches, weight, bias, out_dtype):
    """relu(patches @ weight + bias).

    patches: (M, K)   weight: (K, Cp)   bias: (1, Cp) f32,  Cp % 128 == 0.
    Returns (M, Cp) in out_dtype.
    """
    M, K = patches.shape
    Cp = weight.shape[1]

    tm = _pick_tm(M)
    tk = _pick_tk(K)
    Mp = _round_up(M, tm)
    Kp = _round_up(K, tk)

    if Mp != M or Kp != K:
        patches = jnp.pad(patches, ((0, Mp - M), (0, Kp - K)))
    if Kp != K:
        weight = jnp.pad(weight, ((0, Kp - K), (0, 0)))

    out = pl.pallas_call(
        _matmul_bias_relu_kernel,
        out_shape=jax.ShapeDtypeStruct((Mp, Cp), out_dtype),
        grid_spec=pltpu.PrefetchScalarGridSpec(
            num_scalar_prefetch=0,
            grid=(Mp // tm, Kp // tk),
            in_specs=[
                pl.BlockSpec((tm, tk), lambda i, k: (i, k)),
                pl.BlockSpec((tk, Cp), lambda i, k: (k, 0)),
                pl.BlockSpec((1, Cp), lambda i, k: (0, 0)),
            ],
            out_specs=pl.BlockSpec((tm, Cp), lambda i, k: (i, 0)),
            scratch_shapes=[pltpu.VMEM((tm, Cp), jnp.float32)],
        ),
        compiler_params=pltpu.CompilerParams(
            dimension_semantics=("parallel", "arbitrary"),
            vmem_limit_bytes=64 * 1024 * 1024),
    )(patches, weight, bias)
    return out[:M]


# ------------------------------- JAX glue ----------------------------------- #

def _im2col_3x3(x_nhwc, stride):
    """3x3 conv, padding=1. Returns ([N*Ho*Wo, 9*C], Ho, Wo)."""
    N, H, W, C = x_nhwc.shape
    xp = jnp.pad(x_nhwc, ((0, 0), (1, 1), (1, 1), (0, 0)))
    Ho = (H + 2 - 3) // stride + 1
    Wo = (W + 2 - 3) // stride + 1
    cols = []
    for dh in range(3):
        for dw in range(3):
            cols.append(xp[:,
                           dh:dh + stride * (Ho - 1) + 1:stride,
                           dw:dw + stride * (Wo - 1) + 1:stride, :])
    patches = jnp.concatenate(cols, axis=-1)          # [N, Ho, Wo, 9*C]
    return patches.reshape(N * Ho * Wo, 9 * C), Ho, Wo


def _fold_bn(bn):
    gamma, beta, rmean, rvar = bn
    s = gamma / jnp.sqrt(rvar + _EPS)
    return s, beta - rmean * s


def _conv_weight_matrix(w_oihw, scale):
    """OIHW -> (kh*kw*Cin, Cout) with the BN scale folded into the columns."""
    cout = w_oihw.shape[0]
    wm = jnp.transpose(w_oihw, (2, 3, 1, 0)).reshape(-1, cout)
    return wm * scale[None, :]


def _pad_cols(a, cp):
    return jnp.pad(a, ((0, 0), (0, cp - a.shape[1])))


def basic_block_forward(x_nchw, params, stride, compute_dtype=jnp.bfloat16):
    N, Cin, H, W = x_nchw.shape
    planes = params['w1'].shape[0]
    Cp = _round_up(planes, _LANE)                      # lane-dense output cols

    x = jnp.transpose(x_nchw, (0, 2, 3, 1))            # NHWC (f32)

    # ---- stage 1: relu(bn1(conv1(x))) ------------------------------------ #
    s1, b1 = _fold_bn(params['bn1'])
    w1 = _pad_cols(_conv_weight_matrix(params['w1'], s1), Cp).astype(compute_dtype)
    b1 = _pad_cols(b1.reshape(1, -1), Cp).astype(jnp.float32)

    patches1, Ho, Wo = _im2col_3x3(x.astype(compute_dtype), stride)
    M = N * Ho * Wo
    out1 = _fused_matmul_bias_relu(patches1, w1, b1, compute_dtype)
    out1 = out1[:, :planes].reshape(N, Ho, Wo, planes)

    # ---- stage 2: relu(bn2(conv2(out1)) + shortcut(x)) -------------------- #
    # The shortcut (1x1 conv + BN, or identity) is merged into the same matmul
    # by concatenating its input along K and stacking its weight rows.
    s2, b2 = _fold_bn(params['bn2'])
    w2 = _conv_weight_matrix(params['w2'], s2)          # (9*planes, planes)

    if 'wsc' in params:
        ssc, bsc = _fold_bn(params['bnsc'])
        wsc = _conv_weight_matrix(params['wsc'], ssc)   # (Cin, planes)
        bias2 = b2 + bsc
        xsc = x[:, ::stride, ::stride, :].reshape(M, Cin)
    else:
        wsc = jnp.eye(planes, dtype=jnp.float32)        # identity shortcut
        bias2 = b2
        xsc = x.reshape(M, planes)

    wt = _pad_cols(jnp.concatenate([w2, wsc], axis=0), Cp).astype(compute_dtype)
    bt = _pad_cols(bias2.reshape(1, -1), Cp).astype(jnp.float32)

    patches2, _, _ = _im2col_3x3(out1, 1)               # already compute_dtype
    pt = jnp.concatenate([patches2, xsc.astype(compute_dtype)], axis=1)

    out = _fused_matmul_bias_relu(pt, wt, bt, jnp.float32)
    out = out[:, :planes].reshape(N, Ho, Wo, planes)
    return jnp.transpose(out, (0, 3, 1, 2)).astype(x_nchw.dtype)   # NCHW


# --------------------------- parameter init --------------------------------- #

def init_basic_block_params(key, in_planes, planes, stride):
    ks = jax.random.split(key, 14)

    def conv_w(k, shape, fan_in):
        return jax.random.normal(k, shape, jnp.float32) / np.sqrt(fan_in)

    def bn_params(k0, k1, k2, k3, c):
        gamma = 1.0 + 0.1 * jax.random.normal(k0, (c,), jnp.float32)
        beta = 0.1 * jax.random.normal(k1, (c,), jnp.float32)
        rmean = 0.1 * jax.random.normal(k2, (c,), jnp.float32)
        rvar = jax.random.uniform(k3, (c,), jnp.float32, 0.5, 1.5)
        return (gamma, beta, rmean, rvar)

    p = {
        'w1': conv_w(ks[0], (planes, in_planes, 3, 3), in_planes * 9),
        'bn1': bn_params(ks[1], ks[2], ks[3], ks[4], planes),
        'w2': conv_w(ks[5], (planes, planes, 3, 3), planes * 9),
        'bn2': bn_params(ks[6], ks[7], ks[8], ks[9], planes),
    }
    if stride != 1 or in_planes != planes:
        p['wsc'] = conv_w(ks[10], (planes, in_planes, 1, 1), in_planes)
        p['bnsc'] = bn_params(ks[11], ks[12], ks[13], ks[0], planes)
    return p


# ------------------------- pure-JAX reference -------------------------------- #

def _reference(x, p, stride):
    def conv(x, w, s, pad):
        return jax.lax.conv_general_dilated(
            x, w, (s, s), ((pad, pad), (pad, pad)),
            dimension_numbers=('NCHW', 'OIHW', 'NCHW'))

    def bn(x, params):
        g, b, rm, rv = params
        sh = (1, -1, 1, 1)
        return (x - rm.reshape(sh)) / jnp.sqrt(rv.reshape(sh) + _EPS) \
            * g.reshape(sh) + b.reshape(sh)

    out = jax.nn.relu(bn(conv(x, p['w1'], stride, 1), p['bn1']))
    out = bn(conv(out, p['w2'], 1, 1), p['bn2'])
    sc = bn(conv(x, p['wsc'], stride, 0), p['bnsc']) if 'wsc' in p else x
    return jax.nn.relu(out + sc)


# --------------------------------- main -------------------------------------- #

if __name__ == "__main__":
    key = jax.random.PRNGKey(0)
    kx, kx2, kp1, kp2 = jax.random.split(key, 4)

    # Case 1: downsampling block (stride=2, channel change -> conv shortcut)
    N, Cin, H, W = 2, 4, 16, 16
    planes, stride = 8, 2
    x = jax.random.normal(kx, (N, Cin, H, W), jnp.float32)
    params = init_basic_block_params(kp1, Cin, planes, stride)
    ref = _reference(x, params, stride)

    out_f32 = jax.block_until_ready(
        basic_block_forward(x, params, stride, compute_dtype=jnp.float32))
    np.testing.assert_allclose(np.asarray(out_f32), np.asarray(ref),
                               rtol=5e-3, atol=5e-3)
    out_bf16 = jax.block_until_ready(
        basic_block_forward(x, params, stride, compute_dtype=jnp.bfloat16))
    np.testing.assert_allclose(np.asarray(out_bf16), np.asarray(ref),
                               rtol=5e-2, atol=1e-1)

    # Case 2: identity shortcut (stride=1, in_planes == planes)
    x2 = jax.random.normal(kx2, (N, planes, H, W), jnp.float32)
    params2 = init_basic_block_params(kp2, planes, planes, 1)
    ref2 = _reference(x2, params2, 1)

    out2_f32 = jax.block_until_ready(
        basic_block_forward(x2, params2, 1, compute_dtype=jnp.float32))
    np.testing.assert_allclose(np.asarray(out2_f32), np.asarray(ref2),
                               rtol=5e-3, atol=5e-3)
    out2_bf16 = jax.block_until_ready(
        basic_block_forward(x2, params2, 1, compute_dtype=jnp.bfloat16))
    np.testing.assert_allclose(np.asarray(out2_bf16), np.asarray(ref2),
                               rtol=5e-2, atol=1e-1)

    print("KERNEL_OK")
</pallas_src>

<mosaic_0001>
module attributes {stable_mosaic.version = 11 : i64} {
  func.func @_matmul_bias_relu_kernel(%arg0: i32, %arg1: i32, %arg2: memref<64x36xf32, #tpu.memory_space<vmem>>, %arg3: memref<36x128xf32, #tpu.memory_space<vmem>>, %arg4: memref<1x128xf32, #tpu.memory_space<vmem>>, %arg5: memref<64x128xf32, #tpu.memory_space<vmem>>, %arg6: memref<64x128xf32, #tpu.memory_space<vmem>>) attributes {dimension_semantics = [#tpu.dimension_semantics<parallel>, #tpu.dimension_semantics<arbitrary>], iteration_bounds = array<i64: 2, 1>, scalar_prefetch = 0 : i64, scratch_operands = 1 : i64, tpu.core_type = #tpu.core_type<tc>, window_params = [{transform_indices = @transform_0, window_bounds = array<i64: 64, 36>}, {transform_indices = @transform_1, window_bounds = array<i64: 36, 128>}, {pipeline_mode = #tpu.pipeline_mode<synchronous>, transform_indices = @transform_2, window_bounds = array<i64: 1, 128>}, {transform_indices = @transform_3, window_bounds = array<i64: 64, 128>}]} {
    %c0_i32 = arith.constant 0 : i32
    %0 = arith.cmpi eq, %arg1, %c0_i32 : i32
    %1 = arith.extui %0 : i1 to i32
    %c0_i32_0 = arith.constant 0 : i32
    %2 = arith.cmpi ne, %1, %c0_i32_0 : i32
    scf.if %2 {
      %cst_10 = arith.constant 0.000000e+00 : f32
      %12 = vector.broadcast %cst_10 : f32 to vector<64x128xf32>
      %c0_11 = arith.constant 0 : index
      %c0_12 = arith.constant 0 : index
      %13 = vector.load %arg6[%c0_11, %c0_12] : memref<64x128xf32, #tpu.memory_space<vmem>>, vector<64x128xf32>
      tpu.vector_store %arg6[%c0_11, %c0_12], %12 {strides = array<i32>} : memref<64x128xf32, #tpu.memory_space<vmem>>, vector<64x128xf32>,
    } else {
    }
    %c0 = arith.constant 0 : index
    %c0_1 = arith.constant 0 : index
    %3 = vector.load %arg6[%c0, %c0_1] : memref<64x128xf32, #tpu.memory_space<vmem>>, vector<64x128xf32>
    %c0_2 = arith.constant 0 : index
    %c0_3 = arith.constant 0 : index
    %4 = vector.load %arg2[%c0_2, %c0_3] : memref<64x36xf32, #tpu.memory_space<vmem>>, vector<64x36xf32>
    %c0_4 = arith.constant 0 : index
    %c0_5 = arith.constant 0 : index
    %5 = vector.load %arg3[%c0_4, %c0_5] : memref<36x128xf32, #tpu.memory_space<vmem>>, vector<36x128xf32>
    %cst = arith.constant dense<0.000000e+00> : vector<64x128xf32>
    %6 = tpu.matmul %4, %5, %cst {dimension_numbers = #tpu.dot_dimension_numbers<[1], [0], [0], [1], [0, 0, 1, 1], [], []>} : vector<64x36xf32>, vector<36x128xf32>, vector<64x128xf32> -> vector<64x128xf32>
    %7 = arith.addf %3, %6 : vector<64x128xf32>
    %c0_6 = arith.constant 0 : index
    %c0_7 = arith.constant 0 : index
    %8 = vector.load %arg6[%c0_6, %c0_7] : memref<64x128xf32, #tpu.memory_space<vmem>>, vector<64x128xf32>
    tpu.vector_store %arg6[%c0_6, %c0_7], %7 {strides = array<i32>} : memref<64x128xf32, #tpu.memory_space<vmem>>, vector<64x128xf32>,
    %c0_i32_8 = arith.constant 0 : i32
    %9 = arith.cmpi eq, %arg1, %c0_i32_8 : i32
    %10 = arith.extui %9 : i1 to i32
    %c0_i32_9 = arith.constant 0 : i32
    %11 = arith.cmpi ne, %10, %c0_i32_9 : i32
    scf.if %11 {
      %c0_10 = arith.constant 0 : index
      %c0_11 = arith.constant 0 : index
      %12 = vector.load %arg6[%c0_10, %c0_11] : memref<64x128xf32, #tpu.memory_space<vmem>>, vector<64x128xf32>
      %c0_12 = arith.constant 0 : index
      %c0_13 = arith.constant 0 : index
      %13 = vector.load %arg4[%c0_12, %c0_13] : memref<1x128xf32, #tpu.memory_space<vmem>>, vector<1x128xf32>
      %14 = vector.broadcast %13 : vector<1x128xf32> to vector<64x128xf32>
      %15 = arith.addf %12, %14 : vector<64x128xf32>
      %cst_14 = arith.constant 0.000000e+00 : f32
      %16 = vector.broadcast %cst_14 : f32 to vector<64x128xf32>
      %17 = arith.maximumf %15, %16 : vector<64x128xf32>
      %c0_15 = arith.constant 0 : index
      %c0_16 = arith.constant 0 : index
      %18 = vector.load %arg5[%c0_15, %c0_16] : memref<64x128xf32, #tpu.memory_space<vmem>>, vector<64x128xf32>
      tpu.vector_store %arg5[%c0_15, %c0_16], %17 {strides = array<i32>} : memref<64x128xf32, #tpu.memory_space<vmem>>, vector<64x128xf32>,
    } else {
    }
    return
  }
  func.func @transform_0(%arg0: i32, %arg1: i32) -> (i32, i32) {
    %c0_i32 = arith.constant 0 : i32
    return %arg0, %arg1 : i32, i32
  }
  func.func @transform_1(%arg0: i32, %arg1: i32) -> (i32, i32) {
    %c0_i32 = arith.constant 0 : i32
    %c0_i32_0 = arith.constant 0 : i32
    return %arg1, %c0_i32 : i32, i32
  }
  func.func @transform_2(%arg0: i32, %arg1: i32) -> (i32, i32) {
    %c0_i32 = arith.constant 0 : i32
    %c0_i32_0 = arith.constant 0 : i32
    %c0_i32_1 = arith.constant 0 : i32
    return %c0_i32, %c0_i32_0 : i32, i32
  }
  func.func @transform_3(%arg0: i32, %arg1: i32) -> (i32, i32) {
    %c0_i32 = arith.constant 0 : i32
    %c0_i32_0 = arith.constant 0 : i32
    return %arg0, %c0_i32 : i32, i32
  }
}

</mosaic_0001>

<llo_original>
// kernel: tpu_custom_call.1
$region0: #{tpu_custom_call.1}
  #allocation0 [shape = 'u32[]', space=smem, size = 0x4, offset = 0x4, fixed_abs, tag = 'smem constant byte address 0x4 - core index']
  #allocation1 [shape = 'u32[144,128]{1,0:T(1,128)}', space=vmem, size = 0x12000, scoped, tag = 'internal scratch']
  #allocation2 [shape = 'f32[64,128]{1,0:T(8,128)}', space=vmem, size = 0x8000, scoped, tag = 'scratch operand']
  %s0 = inlined_call_operand.vmem [shape: f32[128,36], index: 0, kind: input, shape index: {}]
  %s1 = inlined_call_operand.vmem [shape: f32[36,128], index: 1, kind: input, shape index: {}]
  %s2 = inlined_call_operand.vmem [shape: f32[1,128], index: 2, kind: input, shape index: {}]
  %s3 = inlined_call_operand.hbm [shape: f32[128,128], index: 3, kind: output, shape index: {}]
  %s4 = sld [smem:[#allocation0]]
  $region53: #{tpu_custom_call.1} parent=0
    _
  %s6 = ssub.s32 1, %s4
  %s7 = scalar_select 0, %s6, %s4
  $region1: #{tpu_custom_call.1} parent=0
    #allocation3 [shape = 'u8[65536]{0}', space=vmem, size = 0x10000, scoped, tag = 'output window, operand 0']
    #allocation4 [shape = 's32[2]{0}', space=sflag, size = 0x8, scoped, tag = 'scoped memory for tpu_custom_call.1']
    %8 = vsyncpa [#allocation4], 0
    %s9 = scalar_lea.sflag [#allocation4], 1
    %10 = vsyncpa %s9, 0
    loop: start=0, step=1, limit=4
    $region2: #{tpu_custom_call.1} parent=1 // loop_pre_header
      _
    $region3: #{tpu_custom_call.1} parent=1 // loop_header
      %s12 = sphi 0, %s16
      %p13 = scmp.ge.s32.totalorder %s12, 4
      %s19 = sphi 0, %s31
      %s20 = sphi 0, %s27
      %s21 = sphi 0, %s19
      %s22 = sphi 0, %s20
      %s23 = sphi 0, %s21
      %s24 = sphi 0, %s22
      %s36 = sphi 0, %s38
      %s39 = sphi 0, %s36
      %s40 = sphi 0, %s39
      %s56 = sphi 0, %s40
      %s62 = sphi 0, %s64
      %s65 = sphi 0, %s62
      %s66 = sphi 0, %s65
      %s82 = sphi 0, %s66
      %s86 = sphi 0, %s86
      %s88 = sphi 0, %s86
      %s89 = sphi 0, %s88
      %s103 = sphi 0, %s89
      %s109 = sphi 0, %s111
      %s112 = sphi 0, %s109
      %s113 = sphi 0, %s112
      %s129 = sphi 0, %s113
    $region4: #{tpu_custom_call.1} parent=1 // loop_header_branch
      %15 = sbr.rel (%p13) target = $region8
    $region5: #{tpu_custom_call.1} parent=1 // loop_body
      %s17 = ssub.s32 %s12, 1
      %s18 = ssub.s32 %s12, 2
      %s25 = sadd.s32 1, %s20
      %p26 = scmp.ge.s32.totalorder %s25, 1
      %s27 = scalar_select %p26, 0, %s25
      %s28 = sadd.s32 1, %s19
      %s29 = scalar_select %p26, %s28, %s19
      %p30 = scmp.ge.s32.totalorder %s29, 2
      %s31 = scalar_select %p30, 0, %s29
      %s32 = ssub.s32 %s19, %s31
      %s33 = ssub.s32 %s20, %s27
      %s34 = sor.u32 %s32, %s33
      %p35 = scmp.eq.s32.totalorder %s34, 0
      %s37 = sadd.s32 %s36, 1
      %s38 = scalar_select %p35, %s36, %s37
      %p41 = pneg %p35
      %p42 = scmp.eq.s32.totalorder %s12, 1
      %p43 = por %p41, %p42
      %p44 = scmp.ne.s32.totalorder %s36, %s39
      %p45 = scmp.eq.s32.totalorder %s12, 0
      %p46 = por %p44, %p45
      %p47 = scmp.ne.s32.totalorder %s36, %s39
      %p48 = scmp.eq.s32.totalorder %s17, 1
      %p49 = por %p47, %p48
      %p50 = scmp.ne.s32.totalorder %s39, %s40
      %p51 = scmp.eq.s32.totalorder %s17, 0
      %p52 = por %p50, %p51
      %p53 = scmp.ne.s32.totalorder %s39, %s40
      %p54 = scmp.eq.s32.totalorder %s18, 1
      %p55 = por %p53, %p54
      %p57 = scmp.ne.s32.totalorder %s40, %s56
      %p58 = scmp.eq.s32.totalorder %s18, 0
      %p59 = por %p57, %p58
      %s60 = ssub.s32 %s20, %s27
      %p61 = scmp.eq.s32.totalorder %s60, 0
      %s63 = sadd.s32 %s62, 1
      %s64 = scalar_select %p61, %s62, %s63
      %p67 = pneg %p61
      %p68 = scmp.eq.s32.totalorder %s12, 1
      %p69 = por %p67, %p68
      %p70 = scmp.ne.s32.totalorder %s62, %s65
      %p71 = scmp.eq.s32.totalorder %s12, 0
      %p72 = por %p70, %p71
      %p73 = scmp.ne.s32.totalorder %s62, %s65
      %p74 = scmp.eq.s32.totalorder %s17, 1
      %p75 = por %p73, %p74
      %p76 = scmp.ne.s32.totalorder %s65, %s66
      %p77 = scmp.eq.s32.totalorder %s17, 0
      %p78 = por %p76, %p77
      %p79 = scmp.ne.s32.totalorder %s65, %s66
      %p80 = scmp.eq.s32.totalorder %s18, 1
      %p81 = por %p79, %p80
      %p83 = scmp.ne.s32.totalorder %s66, %s82
      %p84 = scmp.eq.s32.totalorder %s18, 0
      %p85 = por %p83, %p84
      %s87 = sadd.s32 %s86, 1
      %p90 = scmp.eq.s32.totalorder %s12, 1
      %p91 = scmp.ne.s32.totalorder %s86, %s88
      %p92 = scmp.eq.s32.totalorder %s12, 0
      %p93 = por %p91, %p92
      %p94 = scmp.ne.s32.totalorder %s86, %s88
      %p95 = scmp.eq.s32.totalorder %s17, 1
      %p96 = por %p94, %p95
      %p97 = scmp.ne.s32.totalorder %s88, %s89
      %p98 = scmp.eq.s32.totalorder %s17, 0
      %p99 = por %p97, %p98
      %p100 = scmp.ne.s32.totalorder %s88, %s89
      %p101 = scmp.eq.s32.totalorder %s18, 1
      %p102 = por %p100, %p101
      %p104 = scmp.ne.s32.totalorder %s89, %s103
      %p105 = scmp.eq.s32.totalorder %s18, 0
      %p106 = por %p104, %p105
      %s107 = ssub.s32 %s19, %s31
      %p108 = scmp.eq.s32.totalorder %s107, 0
      %s110 = sadd.s32 %s109, 1
      %s111 = scalar_select %p108, %s109, %s110
      %p114 = pneg %p108
      %p115 = scmp.eq.s32.totalorder %s12, 1
      %p116 = por %p114, %p115
      %p117 = scmp.ne.s32.totalorder %s109, %s112
      %p118 = scmp.eq.s32.totalorder %s12, 0
      %p119 = por %p117, %p118
      %p120 = scmp.ne.s32.totalorder %s109, %s112
      %p121 = scmp.eq.s32.totalorder %s17, 1
      %p122 = por %p120, %p121
      %p123 = scmp.ne.s32.totalorder %s112, %s113
      %p124 = scmp.eq.s32.totalorder %s17, 0
      %p125 = por %p123, %p124
      %p126 = scmp.ne.s32.totalorder %s112, %s113
      %p127 = scmp.eq.s32.totalorder %s18, 1
      %p128 = por %p126, %p127
      %p130 = scmp.ne.s32.totalorder %s113, %s129
      %p131 = scmp.eq.s32.totalorder %s18, 0
      %p132 = por %p130, %p131
      %p133 = scmp.le.s32.totalorder 1, %s12
      %p134 = scmp.lt.s32.totalorder %s12, 3
      %p135 = pnand %p133, %p134
      %p136 = pneg %p135
      // Predicated region
      $region9: #{tpu_custom_call.1} parent=5 // pred_check
        _
      $region10: #{tpu_custom_call.1} parent=5 // pred_check_branch
        %138 = sbr.rel (%p135) target = $region12
      $region11: #{tpu_custom_call.1} parent=5 // pred_region
        %s139 = ssub.s32 %s12, 1
        // Predicated region
        $region13: #{tpu_custom_call.1} parent=11 // pred_check
          %p140 = pneg %p78
        $region14: #{tpu_custom_call.1} parent=11 // pred_check_branch
          %142 = sbr.rel (%p140) target = $region16
        $region15: #{tpu_custom_call.1} parent=11 // pred_region
          %s143 = smul.u32 5, %s22
          %p144 = scmp.lt.s32.totalorder %s143, 4
          %s145 = scalar_select %p144, %s143, 4
          %s146 = smul.addr %s145, 8
          %s147 = scalar_lea.vmem %s1, %s146
          %s148 = smul.u32 5, %s22
        $region16: #{tpu_custom_call.1} parent=11 // pred_fallthru
          _
        // Predicated region
        $region17: #{tpu_custom_call.1} parent=11 // pred_check
          %p149 = pneg %p99
        $region18: #{tpu_custom_call.1} parent=11 // pred_check_branch
          %151 = sbr.rel (%p149) target = $region20
        $region19: #{tpu_custom_call.1} parent=11 // pred_region
          _
        $region20: #{tpu_custom_call.1} parent=11 // pred_fallthru
          _
      $region12: #{tpu_custom_call.1} parent=5 // pred_fallthru
        _
      %p152 = scmp.lt.s32.totalorder %s12, 2
      // Predicated region
      $region21: #{tpu_custom_call.1} parent=5 // pred_check
        %p153 = pneg %p152
      $region22: #{tpu_custom_call.1} parent=5 // pred_check_branch
        %155 = sbr.rel (%p153) target = $region24
      $region23: #{tpu_custom_call.1} parent=5 // pred_region
        // Predicated region
        $region25: #{tpu_custom_call.1} parent=23 // pred_check
          %p156 = pneg %p46
        $region26: #{tpu_custom_call.1} parent=23 // pred_check_branch
          %158 = sbr.rel (%p156) target = $region28
        $region27: #{tpu_custom_call.1} parent=23 // pred_region
          %s159 = smul.u32 8, %s19
          %p160 = scmp.lt.s32.totalorder %s159, 15
          %s161 = scalar_select %p160, %s159, 15
          %p162 = scmp.lt.s32.totalorder %s20, 0
          %s163 = scalar_select %p162, %s20, 0
          %s164 = sadd.s32 %s163, %s161
          %s165 = smul.addr %s164, 8
          %s166 = scalar_lea.vmem %s0, %s165
          %s167 = smul.u32 8, %s19
        $region28: #{tpu_custom_call.1} parent=23 // pred_fallthru
          _
      $region24: #{tpu_custom_call.1} parent=5 // pred_fallthru
        _
      %p168 = scmp.le.s32.totalorder 1, %s12
      %p169 = scmp.lt.s32.totalorder %s12, 3
      %p170 = pnand %p168, %p169
      %p171 = pneg %p170
      // Predicated region
      $region29: #{tpu_custom_call.1} parent=5 // pred_check
        _
      $region30: #{tpu_custom_call.1} parent=5 // pred_check_branch
        %173 = sbr.rel (%p170) target = $region32
      $region31: #{tpu_custom_call.1} parent=5 // pred_region
        %s174 = ssub.s32 %s12, 1
        %s175 = smul.u32 8, %s21
        %p176 = scmp.lt.s32.totalorder %s175, 15
        %s177 = scalar_select %p176, %s175, 15
        %p178 = scmp.lt.s32.totalorder %s22, 0
        %s179 = scalar_select %p178, %s22, 0
        %s180 = sadd.s32 %s179, %s177
        %s181 = smul.addr %s180, 8
        %s182 = scalar_lea.vmem %s0, %s181
        %p183 = pneg %p52
        %p184 = pneg %p49
        %s185 = smul.u32 5, %s22
        %p186 = scmp.lt.s32.totalorder %s185, 4
        %s187 = scalar_select %p186, %s185, 4
        %s188 = smul.addr %s187, 8
        %s189 = scalar_lea.vmem %s1, %s188
        %p190 = pneg %p78
        %p191 = pneg %p75
        %p192 = pneg %p99
        %p193 = pneg %p96
        %p194 = pneg %p125
        %p195 = pneg %p122
        %s196 = sand.u32 %s112, 1
        %s197 = scalar_lea.sflag [#allocation4], %s196
        %s198 = sand.u32 %s112, 1
        %s199 = smul.addr %s198, 64
        %s200 = scalar_lea.vmem [#allocation3], %s199
        %s201 = smul.u32 8, %s21
        %p202 = scmp.lt.s32.totalorder %s201, 15
        %s203 = scalar_select %p202, %s201, 15
        %p204 = scmp.lt.s32.totalorder %s22, 0
        %s205 = scalar_select %p204, %s22, 0
        %s206 = sadd.s32 %s205, %s203
        %s207 = smul.addr %s206, 8
        %s208 = scalar_lea.vmem %s0, %s207
        %s209 = smul.u32 8, %s21
        %s210 = smul.u32 5, %s22
        %p211 = scmp.lt.s32.totalorder %s210, 4
        %s212 = scalar_select %p211, %s210, 4
        %s213 = smul.addr %s212, 8
        %s214 = scalar_lea.vmem %s1, %s213
        %s215 = smul.u32 5, %s22
        %s216 = smul.u32 8, %s21
        %p217 = scmp.eq.s32.totalorder %s22, 0
        // Predicated region
        $region33: #{tpu_custom_call.1} parent=31 // pred_check
          %p218 = pneg %p217
        $region34: #{tpu_custom_call.1} parent=31 // pred_check_branch
          %220 = sbr.rel (%p218) target = $region36
        $region35: #{tpu_custom_call.1} parent=31 // pred_region
          %221 = vst [vmem:[#allocation2] sm:$0xff] 0.0
          %222 = vst [vmem:[#allocation2 + $0x8] sm:$0xff] 0.0
          %223 = vst [vmem:[#allocation2 + $0x10] sm:$0xff] 0.0
          %224 = vst [vmem:[#allocation2 + $0x18] sm:$0xff] 0.0
          %225 = vst [vmem:[#allocation2 + $0x20] sm:$0xff] 0.0
          %226 = vst [vmem:[#allocation2 + $0x28] sm:$0xff] 0.0
          %227 = vst [vmem:[#allocation2 + $0x30] sm:$0xff] 0.0
          %228 = vst [vmem:[#allocation2 + $0x38] sm:$0xff] 0.0
        $region36: #{tpu_custom_call.1} parent=31 // pred_fallthru
          _
        %v229 = vld [vmem:[#allocation2] sm:$0xff]
        %v230 = vld [vmem:[#allocation2 + $0x8] sm:$0xff]
        %v231 = vld [vmem:[#allocation2 + $0x10] sm:$0xff]
        %v232 = vld [vmem:[#allocation2 + $0x18] sm:$0xff]
        %v233 = vld [vmem:[#allocation2 + $0x20] sm:$0xff]
        %v234 = vld [vmem:[#allocation2 + $0x28] sm:$0xff]
        %v235 = vld [vmem:[#allocation2 + $0x30] sm:$0xff]
        %v236 = vld [vmem:[#allocation2 + $0x38] sm:$0xff]
        %v237 = vld [vmem:[%s208] sm:$0xff]
        %v238 = vld [vmem:[%s208 + $0x8] sm:$0xff]
        %v239 = vld [vmem:[%s208 + $0x10] sm:$0xff]
        %v240 = vld [vmem:[%s208 + $0x18] sm:$0xff]
        %v241 = vld [vmem:[%s208 + $0x20] sm:$0xff]
        %v242 = vld [vmem:[%s208 + $0x28] sm:$0xff]
        %v243 = vld [vmem:[%s208 + $0x30] sm:$0xff]
        %v244 = vld [vmem:[%s208 + $0x38] sm:$0xff]
        %v245 = vld [vmem:[%s214] sm:$0xff]
        %v246 = vld [vmem:[%s214 + $0x8] sm:$0xff]
        %v247 = vld [vmem:[%s214 + $0x10] sm:$0xff]
        %v248 = vld [vmem:[%s214 + $0x18] sm:$0xff]
        %v249 = vld [vmem:[%s214 + $0x20] sm:$0xf]
        %vm250 = vcmask 293888
        %v252 = vsel %vm250, %v237, 0
        %v255 = vsel %vm250, %v238, 0
        %v258 = vsel %vm250, %v239, 0
        %v261 = vsel %vm250, %v240, 0
        %v264 = vsel %vm250, %v241, 0
        %v267 = vsel %vm250, %v242, 0
        %v270 = vsel %vm250, %v243, 0
        %v273 = vsel %vm250, %v244, 0
        %vm275 = vcmask 1043456
        %v277 = vsel %vm275, %v249, 0
        %279 = vmatprep.subr.mxu0 0.0
        %280 = vmatpush1.msra.mxu0 0.0
        %281 = vmatprep.subr.mxu0 0.0
        %282 = vmatpush1.msra.mxu0 0.0
        %283 = vmatprep.subr.mxu0 0.0
        %284 = vmatpush1.msra.mxu0 0.0
        %285 = vmatprep.subr.mxu0 0.0
        %286 = vmatpush1.msra.mxu0 0.0
        %287 = vmatprep.subr.mxu0 0.0
        %288 = vmatpush1.msra.mxu0 0.0
        %289 = vmatprep.subr.mxu0 0.0
        %290 = vmatpush1.msra.mxu0 0.0
        %291 = vmatprep.subr.mxu0 0.0
        %292 = vmatpush1.msra.mxu0 0.0
        %293 = vmatprep.subr.mxu0 0.0
        %294 = vmatpush1.msra.mxu0 0.0
        %295 = vmatprep.subr.mxu0 0.0
        %296 = vmatpush1.msra.mxu0 0.0
        %297 = vmatprep.subr.mxu0 0.0
        %298 = vmatpush1.msra.mxu0 0.0
        %299 = vmatprep.subr.mxu0 0.0
        %300 = vmatpush1.msra.mxu0 0.0
        %301 = vmatprep.subr.mxu0 0.0
        %302 = vmatpush1.msra.mxu0 %v277
        %303 = vmatprep.subr.mxu0 0.0
        %304 = vmatpush1.msra.mxu0 %v248
        %305 = vmatprep.subr.mxu0 0.0
        %306 = vmatpush1.msra.mxu0 %v247
        %307 = vmatprep.subr.mxu0 0.0
        %308 = vmatpush1.msra.mxu0 %v246
        %309 = vmatprep.subr.mxu0 0.0
        %310 = vmatpush1.msra.mxu0 %v245
        %311 = vmatprep.subr.mxu0 0.0
        %312 = vmatpush2.msra.mxu0 0.0
        %313 = vmatprep.subr.mxu0 0.0
        %314 = vmatpush2.msra.mxu0 0.0
        %315 = vmatprep.subr.mxu0 0.0
        %316 = vmatpush2.msra.mxu0 0.0
        %317 = vmatprep.subr.mxu0 0.0
        %318 = vmatpush2.msra.mxu0 0.0
        %319 = vmatprep.subr.mxu0 0.0
        %320 = vmatpush2.msra.mxu0 0.0
        %321 = vmatprep.subr.mxu0 0.0
        %322 = vmatpush2.msra.mxu0 0.0
        %323 = vmatprep.subr.mxu0 0.0
        %324 = vmatpush2.msra.mxu0 0.0
        %325 = vmatprep.subr.mxu0 0.0
        %326 = vmatpush2.msra.mxu0 0.0
        %327 = vmatprep.subr.mxu0 0.0
        %328 = vmatpush2.msra.mxu0 0.0
        %329 = vmatprep.subr.mxu0 0.0
        %330 = vmatpush2.msra.mxu0 0.0
        %331 = vmatprep.subr.mxu0 0.0
        %332 = vmatpush2.msra.mxu0 0.0
        %333 = vmatprep.subr.mxu0 0.0
        %334 = vmatpush2.msra.mxu0 0.0
        %335 = vmatprep.subr.mxu0 0.0
        %336 = vmatpush2.msra.mxu0 0.0
        %337 = vmatprep.subr.mxu0 0.0
        %338 = vmatpush2.msra.mxu0 0.0
        %339 = vmatprep.subr.mxu0 0.0
        %340 = vmatpush2.msra.mxu0 0.0
        %341 = vmatprep.subr.mxu0 0.0
        %342 = vmatpush2.msra.mxu0 0.0
        %343 = vmatprep.mubr.f32.mxu0 0.0
        %344 = vmatmul.mubr.f32.gmra.mxu0 %v252
        %v345 = vpop.f32.mrf.mxu0
        %v346 = vadd.f32 0.0, %v345
        %v347 = vpop.f32.mrf.mxu0
        %348 = vmatprep.mubr.f32.mxu0 0.0
        %349 = vmatmul.mubr.f32.gmra.mxu0 %v255
        %v350 = vpop.f32.mrf.mxu0
        %v351 = vadd.f32 0.0, %v350
        %v352 = vpop.f32.mrf.mxu0
        %353 = vmatprep.mubr.f32.mxu0 0.0
        %354 = vmatmul.mubr.f32.gmra.mxu0 %v258
        %v355 = vpop.f32.mrf.mxu0
        %v356 = vadd.f32 0.0, %v355
        %v357 = vpop.f32.mrf.mxu0
        %358 = vmatprep.mubr.f32.mxu0 0.0
        %359 = vmatmul.mubr.f32.gmra.mxu0 %v261
        %v360 = vpop.f32.mrf.mxu0
        %v361 = vadd.f32 0.0, %v360
        %v362 = vpop.f32.mrf.mxu0
        %363 = vmatprep.mubr.f32.mxu0 0.0
        %364 = vmatmul.mubr.f32.gmra.mxu0 %v264
        %v365 = vpop.f32.mrf.mxu0
        %v366 = vadd.f32 0.0, %v365
        %v367 = vpop.f32.mrf.mxu0
        %368 = vmatprep.mubr.f32.mxu0 0.0
        %369 = vmatmul.mubr.f32.gmra.mxu0 %v267
        %v370 = vpop.f32.mrf.mxu0
        %v371 = vadd.f32 0.0, %v370
        %v372 = vpop.f32.mrf.mxu0
        %373 = vmatprep.mubr.f32.mxu0 0.0
        %374 = vmatmul.mubr.f32.gmra.mxu0 %v270
        %v375 = vpop.f32.mrf.mxu0
        %v376 = vadd.f32 0.0, %v375
        %v377 = vpop.f32.mrf.mxu0
        %378 = vmatprep.mubr.f32.mxu0 0.0
        %379 = vmatmul.mubr.f32.gmra.mxu0 %v273
        %v380 = vpop.f32.mrf.mxu0
        %v381 = vadd.f32 0.0, %v380
        %v382 = vpop.f32.mrf.mxu0
        %383 = vdwg.mxu0
        %v384 = vadd.f32 %v229, %v346
        %v385 = vadd.f32 %v230, %v351
        %v386 = vadd.f32 %v231, %v356
        %v387 = vadd.f32 %v232, %v361
        %v388 = vadd.f32 %v233, %v366
        %v389 = vadd.f32 %v234, %v371
        %v390 = vadd.f32 %v235, %v376
        %v391 = vadd.f32 %v236, %v381
        %392 = vst [vmem:[#allocation2] sm:$0xff] %v384
        %393 = vst [vmem:[#allocation2 + $0x8] sm:$0xff] %v385
        %394 = vst [vmem:[#allocation2 + $0x10] sm:$0xff] %v386
        %395 = vst [vmem:[#allocation2 + $0x18] sm:$0xff] %v387
        %396 = vst [vmem:[#allocation2 + $0x20] sm:$0xff] %v388
        %397 = vst [vmem:[#allocation2 + $0x28] sm:$0xff] %v389
        %398 = vst [vmem:[#allocation2 + $0x30] sm:$0xff] %v390
        %399 = vst [vmem:[#allocation2 + $0x38] sm:$0xff] %v391
        // Predicated region
        $region37: #{tpu_custom_call.1} parent=31 // pred_check
          %p400 = pneg %p217
        $region38: #{tpu_custom_call.1} parent=31 // pred_check_branch
          %402 = sbr.rel (%p400) target = $region40
        $region39: #{tpu_custom_call.1} parent=31 // pred_region
          %v403 = vld [vmem:[#allocation2] sm:$0xff]
          %v404 = vld [vmem:[#allocation2 + $0x8] sm:$0xff]
          %v405 = vld [vmem:[#allocation2 + $0x10] sm:$0xff]
          %v406 = vld [vmem:[#allocation2 + $0x18] sm:$0xff]
          %v407 = vld [vmem:[#allocation2 + $0x20] sm:$0xff]
          %v408 = vld [vmem:[#allocation2 + $0x28] sm:$0xff]
          %v409 = vld [vmem:[#allocation2 + $0x30] sm:$0xff]
          %v410 = vld [vmem:[#allocation2 + $0x38] sm:$0xff]
          %v411 = vld [vmem:[%s2] sm:$0x1]
          %v413 = vlaneseq
          %v414 = vshrl.u32 %v413, 7
          %v415 = vsub.s32 0, %v414
          %v416 = vrot.slane %v411, %v415
          %v418 = vadd.f32 %v403, %v416
          %v419 = vadd.f32 %v404, %v416
          %v420 = vadd.f32 %v405, %v416
          %v421 = vadd.f32 %v406, %v416
          %v422 = vadd.f32 %v407, %v416
          %v423 = vadd.f32 %v408, %v416
          %v424 = vadd.f32 %v409, %v416
          %v425 = vadd.f32 %v410, %v416
          %v426 = vmax.f32 %v418, 0.0
          %v427 = vmax.f32 %v419, 0.0
          %v428 = vmax.f32 %v420, 0.0
          %v429 = vmax.f32 %v421, 0.0
          %v430 = vmax.f32 %v422, 0.0
          %v431 = vmax.f32 %v423, 0.0
          %v432 = vmax.f32 %v424, 0.0
          %v433 = vmax.f32 %v425, 0.0
          %434 = vst [vmem:[%s200] sm:$0xff] %v426
          %435 = vst [vmem:[%s200 + $0x8] sm:$0xff] %v427
          %436 = vst [vmem:[%s200 + $0x10] sm:$0xff] %v428
          %437 = vst [vmem:[%s200 + $0x18] sm:$0xff] %v429
          %438 = vst [vmem:[%s200 + $0x20] sm:$0xff] %v430
          %439 = vst [vmem:[%s200 + $0x28] sm:$0xff] %v431
          %440 = vst [vmem:[%s200 + $0x30] sm:$0xff] %v432
          %441 = vst [vmem:[%s200 + $0x38] sm:$0xff] %v433
        $region40: #{tpu_custom_call.1} parent=31 // pred_fallthru
          _
        %s442 = sand.u32 %s112, 1
        %s443 = scalar_lea.sflag [#allocation4], %s442
        %s444 = sand.u32 %s112, 1
        %s445 = smul.addr %s444, 64
        %s446 = scalar_lea.vmem [#allocation3], %s445
        // Predicated region
        $region41: #{tpu_custom_call.1} parent=31 // pred_check
          %p447 = pneg %p122
        $region42: #{tpu_custom_call.1} parent=31 // pred_check_branch
          %449 = sbr.rel (%p447) target = $region44
        $region43: #{tpu_custom_call.1} parent=31 // pred_region
          %s450 = smul.u32 8, %s21
          %s452 = ssub.s32 1024, 1024
          %453 = vsyncadd %s443, %s452
          %s454 = smul.addr %s450, 128
          %s455 = scalar_lea.hbm %s3, %s454
          %s456 = sshll.u32 %s446, 4
          %s457 = int_to_ptr.vmem [resolvable:$true] %s456
          %462 = dma.vmem_to_hbm [thread:$0]  %s457, 1024, %s455, %s443, 128, 128, 8
        $region44: #{tpu_custom_call.1} parent=31 // pred_fallthru
          _
      $region32: #{tpu_custom_call.1} parent=5 // pred_fallthru
        _
      %p463 = scmp.le.s32.totalorder 2, %s12
      // Predicated region
      $region45: #{tpu_custom_call.1} parent=5 // pred_check
        %p464 = pneg %p463
      $region46: #{tpu_custom_call.1} parent=5 // pred_check_branch
        %466 = sbr.rel (%p464) target = $region48
      $region47: #{tpu_custom_call.1} parent=5 // pred_region
        %s467 = ssub.s32 %s12, 2
        // Predicated region
        $region49: #{tpu_custom_call.1} parent=47 // pred_check
          %p468 = pneg %p128
        $region50: #{tpu_custom_call.1} parent=47 // pred_check_branch
          %470 = sbr.rel (%p468) target = $region52
        $region51: #{tpu_custom_call.1} parent=47 // pred_region
          %s471 = sand.u32 %s113, 1
          %s472 = scalar_lea.sflag [#allocation4], %s471
          %s473 = sand.u32 %s113, 1
          %s474 = smul.addr %s473, 64
          %s475 = scalar_lea.vmem [#allocation3], %s474
          %476 = dma.done %s472, 1024
        $region52: #{tpu_custom_call.1} parent=47 // pred_fallthru
          _
      $region48: #{tpu_custom_call.1} parent=5 // pred_fallthru
        _
    $region6: #{tpu_custom_call.1} parent=1 // loop_footer
      %s16 = sadd.s32 1, %s12
    $region7: #{tpu_custom_call.1} parent=1 // loop_footer_branch
      %11 = sbr.rel target = $region3
    $region8: #{tpu_custom_call.1} parent=1 // loop_exit
      _
    %477 = vsyncpa [#allocation4], 1
    %s478 = scalar_lea.sflag [#allocation4], 1
    %479 = vsyncpa %s478, 1

</llo_original>
